<compile_context>
chip_gen: v7x
topology: tpu7x:2x2x1
jax: 0.10.0
libtpu: 0.0.40
codegen_flags: <defaults>
</compile_context>

<pallas_src>
import jax
import jax.numpy as jnp
from jax import lax
from jax.experimental import pallas as pl
from jax.experimental.pallas import tpu as pltpu

_BN_EPS = 1e-5


def _round_up(x, m):
    return ((x + m - 1) // m) * m


def _largest_tile(dim, cap, unit=128):
    """Largest multiple-of-`unit` divisor of `dim` (dim % unit == 0) <= cap."""
    cap = max(unit, min(cap, dim))
    t = cap - cap % unit
    while t > unit:
        if dim % t == 0:
            return t
        t -= unit
    return unit


def _vmem_limit_bytes():
    """Generation-aware scoped-VMEM limit: ~48 MiB on 64 MiB parts (v7x),
    ~96 MiB on 128 MiB parts (v5e/v6e)."""
    try:
        cap = int(pltpu.get_tpu_info().vmem_capacity_bytes) or (64 << 20)
    except Exception:
        cap = 64 << 20
    return int(min(cap * 3 // 4, 100 << 20))


def _choose_tiles(n, in_pad, out_pad, x_isz, w_isz, o_isz, budget, sub):
    """Return (tm, tn, tk, needs_acc): largest multiple-of-128 feature tiles
    (row tile up to 512) whose double-buffered blocks fit `budget`.  Prefers
    collapsing the reduction (tk == in_pad): no accumulator scratch, no
    init/finalize, inputs DMA'd exactly once per tile."""
    def vmem(tm, tn, tk, acc):
        v = (2 * tm * tk * x_isz      # x block, double-buffered
             + 2 * tn * tk * w_isz    # W block, double-buffered
             + 2 * tm * tn * o_isz)   # output block, double-buffered
        return v + (tm * tn * 4 if acc else 0)

    tm_opts = []
    for cap in (512, 256, 128, sub):
        t = _round_up(min(n, cap), sub)
        if t not in tm_opts:
            tm_opts.append(t)

    # 1) collapsed reduction (tk == in_pad).
    for tn_cap in (512, 256, 128):
        tn = _largest_tile(out_pad, tn_cap)
        for tm in tm_opts:
            if vmem(tm, tn, in_pad, acc=False) <= budget:
                return tm, tn, in_pad, False
    # 2) tiled reduction with a resident f32 accumulator (k innermost).
    for tk_cap in (512, 256, 128):
        tk = _largest_tile(in_pad, tk_cap)
        for tn_cap in (512, 256, 128):
            tn = _largest_tile(out_pad, tn_cap)
            for tm in tm_opts:
                if vmem(tm, tn, tk, acc=True) <= budget:
                    return tm, tn, tk, True
    return sub, 128, 128, True


# --------------------------------- kernels -----------------------------------


def _mxu_matmul(x, w):
    # x: (tm, tk), w: (tn, tk) -> (tm, tn). Contraction on the last dim of
    # BOTH operands (x @ W.T without materializing a transpose), f32 acc.
    return lax.dot_general(x, w, dimension_numbers=(((1,), (1,)), ((), ())),
                           preferred_element_type=jnp.float32)


def _make_linear_kernel(has_bias, needs_acc):
    """Linear kernels: collapsed-K (direct store, no scratch) or K-tiled
    (f32 VMEM accumulator with pl.when init/finalize)."""
    if not needs_acc:
        if has_bias:
            def kernel(x_ref, w_ref, b_ref, o_ref):
                o_ref[...] = (_mxu_matmul(x_ref[...], w_ref[...])
                              + b_ref[...]).astype(o_ref.dtype)
        else:
            def kernel(x_ref, w_ref, o_ref):
                o_ref[...] = _mxu_matmul(x_ref[...],
                                         w_ref[...]).astype(o_ref.dtype)
        return kernel

    if has_bias:
        def kernel(x_ref, w_ref, b_ref, o_ref, acc_ref):
            k = pl.program_id(2)

            @pl.when(k == 0)
            def _():
                acc_ref[...] = jnp.zeros_like(acc_ref)

            acc_ref[...] += _mxu_matmul(x_ref[...], w_ref[...])

            @pl.when(k == pl.num_programs(2) - 1)
            def _():
                o_ref[...] = (acc_ref[...] + b_ref[...]).astype(o_ref.dtype)
    else:
        def kernel(x_ref, w_ref, o_ref, acc_ref):
            k = pl.program_id(2)

            @pl.when(k == 0)
            def _():
                acc_ref[...] = jnp.zeros_like(acc_ref)

            acc_ref[...] += _mxu_matmul(x_ref[...], w_ref[...])

            @pl.when(k == pl.num_programs(2) - 1)
            def _():
                o_ref[...] = acc_ref[...].astype(o_ref.dtype)
    return kernel


def _bn_mm_stats_kernel(x_ref, w_ref, lin_ref, sum_ref, sq_ref):
    # BN pass 1, collapsed K. grid = (j, i): the batch-tile axis i is innermost
    # so the per-j (1, tn) stats blocks stay resident while the whole batch is
    # reduced; the W block index is constant across i (weights read once).
    i = pl.program_id(1)
    y = _mxu_matmul(x_ref[...], w_ref[...])
    lin_ref[...] = y

    @pl.when(i == 0)
    def _():
        sum_ref[...] = jnp.zeros_like(sum_ref)
        sq_ref[...] = jnp.zeros_like(sq_ref)

    sum_ref[...] += jnp.sum(y, axis=0, keepdims=True)
    sq_ref[...] += jnp.sum(y * y, axis=0, keepdims=True)


def _bn_mm_stats_acc_kernel(x_ref, w_ref, lin_ref, sum_ref, sq_ref, acc_ref):
    # BN pass 1, tiled K. grid = (j, i, k), k innermost reduction.
    i = pl.program_id(1)
    k = pl.program_id(2)
    last_k = pl.num_programs(2) - 1

    @pl.when(k == 0)
    def _():
        acc_ref[...] = jnp.zeros_like(acc_ref)

    acc_ref[...] += _mxu_matmul(x_ref[...], w_ref[...])

    @pl.when(jnp.logical_and(i == 0, k == last_k))
    def _():
        sum_ref[...] = jnp.zeros_like(sum_ref)
        sq_ref[...] = jnp.zeros_like(sq_ref)

    @pl.when(k == last_k)
    def _():
        y = acc_ref[...]
        lin_ref[...] = y
        sum_ref[...] += jnp.sum(y, axis=0, keepdims=True)
        sq_ref[...] += jnp.sum(y * y, axis=0, keepdims=True)


def _affine_kernel(lin_ref, scale_ref, shift_ref, o_ref):
    # BN pass 2: elementwise lin * scale + shift (scale/shift fold mean, var,
    # gamma, beta); both grid axes parallel, batch-independent VMEM use.
    o_ref[...] = (lin_ref[...] * scale_ref[...]
                  + shift_ref[...]).astype(o_ref.dtype)


# --------------------------------- wrappers -----------------------------------


def prepare_linear_params(w, b=None, gamma=None, beta=None, *,
                          use_bias=True, use_bn=False, bf16_matmul=False):
    """Pad (128-lane align) and optionally bf16-cast the parameters ONCE,
    outside the forward path (per-call weight padding was an extra full HBM
    read+write of W before the kernel even started)."""
    out_f, in_f = w.shape
    in_pad, out_pad = _round_up(in_f, 128), _round_up(out_f, 128)
    w_p = jnp.pad(w, ((0, out_pad - out_f), (0, in_pad - in_f)))
    if bf16_matmul:
        w_p = w_p.astype(jnp.bfloat16)

    params = {"w": w_p, "in_f": in_f, "out_f": out_f,
              "in_pad": in_pad, "out_pad": out_pad,
              "use_bn": use_bn, "bf16": bf16_matmul,
              "b": None, "gamma": None, "beta": None}
    if use_bn:
        # nn.Linear(bias=False) + BatchNorm1d affine params (gamma=1, beta=0).
        g = (jnp.ones((out_f,), jnp.float32) if gamma is None
             else gamma.astype(jnp.float32))
        bt = (jnp.zeros((out_f,), jnp.float32) if beta is None
              else beta.astype(jnp.float32))
        params["gamma"] = jnp.pad(g, (0, out_pad - out_f),
                                  constant_values=1.0).reshape(1, out_pad)
        params["beta"] = jnp.pad(bt, (0, out_pad - out_f)).reshape(1, out_pad)
    elif use_bias and b is not None:
        params["b"] = jnp.pad(b.astype(jnp.float32),
                              (0, out_pad - out_f)).reshape(1, out_pad)
    return params


def linear_layer(x, params, *, vmem_limit_bytes=None, tile_budget_bytes=None):
    """Forward pass of LinearLayer: y = x @ W.T (+ b | BatchNorm1d)."""
    n, in_f = x.shape
    assert in_f == params["in_f"], "weight / input feature mismatch"
    in_pad, out_pad, out_f = params["in_pad"], params["out_pad"], params["out_f"]
    w_p = params["w"]

    if vmem_limit_bytes is None:
        vmem_limit_bytes = _vmem_limit_bytes()
    if tile_budget_bytes is None:
        # Keep ~half the scoped limit as headroom for compiler scratch,
        # semaphores and the small per-feature operands.
        tile_budget_bytes = vmem_limit_bytes // 2

    x_dtype = jnp.bfloat16 if params["bf16"] else x.dtype
    out_dtype = x.dtype
    x_isz = jnp.dtype(x_dtype).itemsize
    w_isz = jnp.dtype(w_p.dtype).itemsize
    o_isz = jnp.dtype(out_dtype).itemsize
    sub = 16 if x_isz == 2 else 8      # sublane packing of the row-tile dim

    def _cparams(sem):
        return pltpu.CompilerParams(dimension_semantics=sem,
                                    vmem_limit_bytes=vmem_limit_bytes)

    if not params["use_bn"]:
        # --------------------- plain linear (optional bias) ------------------
        tm, tn, tk, needs_acc = _choose_tiles(
            n, in_pad, out_pad, x_isz, w_isz, o_isz, tile_budget_bytes, sub)
        n_pad = _round_up(n, sub) if n <= tm else _round_up(n, tm)
        tm = n_pad if n <= tm else tm
        x_p = jnp.pad(x, ((0, n_pad - n), (0, in_pad - in_f))).astype(x_dtype)
        gi, gj = n_pad // tm, out_pad // tn

        has_bias = params["b"] is not None
        kernel = _make_linear_kernel(has_bias, needs_acc)
        args = (x_p, w_p, params["b"]) if has_bias else (x_p, w_p)

        if not needs_acc:
            # 2-D grid: order it so the operand whose re-streaming costs more
            # HBM traffic has a constant block index on the inner axis, so
            # Pallas skips its re-DMA (true residency).
            if (gi - 1) * out_pad * in_pad * w_isz <= \
                    (gj - 1) * n_pad * in_pad * x_isz:
                grid = (gi, gj)                     # x resident, W streamed
                x_map, w_map = (lambda i, j: (i, 0)), (lambda i, j: (j, 0))
                b_map, o_map = (lambda i, j: (0, j)), (lambda i, j: (i, j))
            else:
                grid = (gj, gi)                     # W resident, x streamed
                x_map, w_map = (lambda j, i: (i, 0)), (lambda j, i: (j, 0))
                b_map, o_map = (lambda j, i: (0, j)), (lambda j, i: (i, j))
            in_specs = [pl.BlockSpec((tm, tk), x_map),
                        pl.BlockSpec((tn, tk), w_map)]
            if has_bias:
                in_specs.append(pl.BlockSpec((1, tn), b_map))
            out_specs = pl.BlockSpec((tm, tn), o_map)
            scratch = []
            sem = ("parallel", "parallel")
        else:
            grid = (gi, gj, in_pad // tk)           # k innermost reduction
            in_specs = [pl.BlockSpec((tm, tk), lambda i, j, k: (i, k)),
                        pl.BlockSpec((tn, tk), lambda i, j, k: (j, k))]
            if has_bias:
                in_specs.append(pl.BlockSpec((1, tn), lambda i, j, k: (0, j)))
            out_specs = pl.BlockSpec((tm, tn), lambda i, j, k: (i, j))
            scratch = [pltpu.VMEM((tm, tn), jnp.float32)]
            sem = ("parallel", "parallel", "arbitrary")

        cost = pl.CostEstimate(
            flops=2 * n_pad * in_pad * out_pad, transcendentals=0,
            bytes_accessed=int(x_p.size * x_isz + w_p.size * w_isz
                               + n_pad * out_pad * o_isz))
        out = pl.pallas_call(
            kernel,
            out_shape=jax.ShapeDtypeStruct((n_pad, out_pad), out_dtype),
            grid_spec=pltpu.PrefetchScalarGridSpec(
                num_scalar_prefetch=0, grid=grid, in_specs=in_specs,
                out_specs=out_specs, scratch_shapes=scratch),
            compiler_params=_cparams(sem),
            cost_estimate=cost,
        )(*args)
        return out[:n, :out_f]

    # -------------------- linear + BatchNorm1d (two passes) ------------------
    # Batch-independent VMEM use (the old path held the full batch in VMEM,
    # which cannot scale on v7x's 64 MiB and re-streamed x per output tile).
    tm, tn, tk, needs_acc = _choose_tiles(
        n, in_pad, out_pad, x_isz, w_isz, 4, tile_budget_bytes, sub)
    n_pad = _round_up(n, sub) if n <= tm else _round_up(n, tm)
    tm = n_pad if n <= tm else tm
    x_p = jnp.pad(x, ((0, n_pad - n), (0, in_pad - in_f))).astype(x_dtype)
    gi, gj = n_pad // tm, out_pad // tn

    out_shapes = (jax.ShapeDtypeStruct((n_pad, out_pad), jnp.float32),  # lin
                  jax.ShapeDtypeStruct((1, out_pad), jnp.float32),      # sum
                  jax.ShapeDtypeStruct((1, out_pad), jnp.float32))      # sumsq
    if not needs_acc:
        grid1 = (gj, gi)
        in_specs1 = [pl.BlockSpec((tm, tk), lambda j, i: (i, 0)),
                     pl.BlockSpec((tn, tk), lambda j, i: (j, 0))]
        out_specs1 = (pl.BlockSpec((tm, tn), lambda j, i: (i, j)),
                      pl.BlockSpec((1, tn), lambda j, i: (0, j)),
                      pl.BlockSpec((1, tn), lambda j, i: (0, j)))
        scratch1 = []
        kernel1 = _bn_mm_stats_kernel
        sem1 = ("parallel", "arbitrary")   # stats reduce over the batch axis
    else:
        grid1 = (gj, gi, in_pad // tk)
        in_specs1 = [pl.BlockSpec((tm, tk), lambda j, i, k: (i, k)),
                     pl.BlockSpec((tn, tk), lambda j, i, k: (j, k))]
        out_specs1 = (pl.BlockSpec((tm, tn), lambda j, i, k: (i, j)),
                      pl.BlockSpec((1, tn), lambda j, i, k: (0, j)),
                      pl.BlockSpec((1, tn), lambda j, i, k: (0, j)))
        scratch1 = [pltpu.VMEM((tm, tn), jnp.float32)]
        kernel1 = _bn_mm_stats_acc_kernel
        sem1 = ("parallel", "arbitrary", "arbitrary")

    cost1 = pl.CostEstimate(
        flops=2 * n_pad * in_pad * out_pad + 3 * n_pad * out_pad,
        transcendentals=0,
        bytes_accessed=int(x_p.size * x_isz + w_p.size * w_isz
                           + (n_pad + 2) * out_pad * 4))
    lin, col_sum, col_sq = pl.pallas_call(
        kernel1, out_shape=out_shapes,
        grid_spec=pltpu.PrefetchScalarGridSpec(
            num_scalar_prefetch=0, grid=grid1, in_specs=in_specs1,
            out_specs=out_specs1, scratch_shapes=scratch1),
        compiler_params=_cparams(sem1),
        cost_estimate=cost1,
    )(x_p, w_p)

    # Per-feature math is tiny (out_pad elements): fold mean/var/gamma/beta
    # into one scale & shift in plain JAX. Training-mode BN (batch statistics,
    # biased variance). Zero-padded batch rows contribute nothing to the sums,
    # so dividing by the true n keeps the statistics exact.
    # TODO(synk): BatchNorm1d running_mean/running_var updates (training-time
    # side effect of the PyTorch module) are not emitted.
    mean = col_sum / n
    var = jnp.maximum(col_sq / n - mean * mean, 0.0)
    scale = params["gamma"] * lax.rsqrt(var + _BN_EPS)
    shift = params["beta"] - mean * scale

    out = pl.pallas_call(
        _affine_kernel,
        out_shape=jax.ShapeDtypeStruct((n_pad, out_pad), out_dtype),
        grid_spec=pltpu.PrefetchScalarGridSpec(
            num_scalar_prefetch=0, grid=(gi, gj),
            in_specs=[pl.BlockSpec((tm, tn), lambda i, j: (i, j)),
                      pl.BlockSpec((1, tn), lambda i, j: (0, j)),
                      pl.BlockSpec((1, tn), lambda i, j: (0, j))],
            out_specs=pl.BlockSpec((tm, tn), lambda i, j: (i, j))),
        compiler_params=_cparams(("parallel", "parallel")),
    )(lin, scale, shift)
    return out[:n, :out_f]


# ------------------------------ demo / check ----------------------------------

if __name__ == "__main__":
    key = jax.random.PRNGKey(0)
    k_x, k_w, k_b, k_x2, k_w2, k_b2, k_x3 = jax.random.split(key, 7)

    batch, in_features, out_features = 256, 384, 256
    bound = 1.0 / (in_features ** 0.5)
    x = jax.random.normal(k_x, (batch, in_features), dtype=jnp.float32)
    w = jax.random.uniform(k_w, (out_features, in_features),
                           minval=-bound, maxval=bound, dtype=jnp.float32)
    b = jax.random.uniform(k_b, (out_features,),
                           minval=-bound, maxval=bound, dtype=jnp.float32)
    gamma = jnp.ones((out_features,), jnp.float32)
    beta = jnp.zeros((out_features,), jnp.float32)

    ref = x @ w.T + b[None, :]

    # 1) use_bias=True, use_bn=False  -> collapsed-K kernel (no accumulator).
    p_bias = prepare_linear_params(w, b, use_bias=True)
    y = linear_layer(x, p_bias)
    jax.block_until_ready(y)
    assert y.shape == ref.shape
    assert jnp.allclose(y, ref, atol=1e-4, rtol=1e-4)

    # 2) use_bn=True -> two-pass (matmul + column stats, then affine).
    p_bn = prepare_linear_params(w, gamma=gamma, beta=beta, use_bn=True)
    y_bn = linear_layer(x, p_bn)
    jax.block_until_ready(y_bn)
    lin = x @ w.T
    mu = lin.mean(axis=0, keepdims=True)
    var = ((lin - mu) ** 2).mean(axis=0, keepdims=True)
    ref_bn = (lin - mu) / jnp.sqrt(var + _BN_EPS) * gamma[None, :] + beta[None, :]
    assert jnp.allclose(y_bn, ref_bn, atol=1e-3, rtol=1e-3)

    # 3) small, unaligned shapes (zero-padding path) + no-bias config.
    n2, i2, o2 = 8, 32, 64
    x2 = jax.random.normal(k_x2, (n2, i2), dtype=jnp.float32)
    w2 = jax.random.uniform(k_w2, (o2, i2), minval=-0.2, maxval=0.2,
                            dtype=jnp.float32)
    b2 = jax.random.uniform(k_b2, (o2,), minval=-0.2, maxval=0.2,
                            dtype=jnp.float32)
    y2 = linear_layer(x2, prepare_linear_params(w2, b2, use_bias=True))
    jax.block_until_ready(y2)
    assert jnp.allclose(y2, x2 @ w2.T + b2[None, :], atol=1e-5, rtol=1e-5)

    y3 = linear_layer(x2, prepare_linear_params(w2, use_bias=False))
    jax.block_until_ready(y3)
    assert jnp.allclose(y3, x2 @ w2.T, atol=1e-5, rtol=1e-5)

    # 4) bf16 MXU path (f32 accumulation), looser tolerance.
    y_bf16 = linear_layer(x, prepare_linear_params(w, b, bf16_matmul=True))
    jax.block_until_ready(y_bf16)
    assert jnp.allclose(y_bf16, ref, atol=5e-2, rtol=5e-2)

    # 5) force the K-tiled accumulator path with a tiny tile budget.
    y_acc = linear_layer(x, p_bias, tile_budget_bytes=400_000)
    jax.block_until_ready(y_acc)
    assert jnp.allclose(y_acc, ref, atol=1e-4, rtol=1e-4)

    # 6) multiple row tiles + unaligned batch (exercises grid-order choice).
    x3 = jax.random.normal(k_x3, (700, in_features), dtype=jnp.float32)
    y4 = linear_layer(x3, p_bias)
    jax.block_until_ready(y4)
    assert jnp.allclose(y4, x3 @ w.T + b[None, :], atol=1e-4, rtol=1e-4)

    print("KERNEL_OK")
</pallas_src>

<mosaic_0001>
module attributes {stable_mosaic.version = 11 : i64} {
  func.func @kernel(%arg0: i32, %arg1: i32, %arg2: memref<256x384xf32, #tpu.memory_space<vmem>>, %arg3: memref<256x384xf32, #tpu.memory_space<vmem>>, %arg4: memref<1x256xf32, #tpu.memory_space<vmem>>, %arg5: memref<256x256xf32, #tpu.memory_space<vmem>>) attributes {dimension_semantics = [#tpu.dimension_semantics<parallel>, #tpu.dimension_semantics<parallel>], iteration_bounds = array<i64: 1, 1>, scalar_prefetch = 0 : i64, scratch_operands = 0 : i64, tpu.core_type = #tpu.core_type<tc>, window_params = [{transform_indices = @transform_0, window_bounds = array<i64: 256, 384>}, {transform_indices = @transform_1, window_bounds = array<i64: 256, 384>}, {transform_indices = @transform_2, window_bounds = array<i64: 1, 256>}, {transform_indices = @transform_3, window_bounds = array<i64: 256, 256>}]} {
    %c0 = arith.constant 0 : index
    %c0_0 = arith.constant 0 : index
    %0 = vector.load %arg2[%c0, %c0_0] : memref<256x384xf32, #tpu.memory_space<vmem>>, vector<256x384xf32>
    %c0_1 = arith.constant 0 : index
    %c0_2 = arith.constant 0 : index
    %1 = vector.load %arg3[%c0_1, %c0_2] : memref<256x384xf32, #tpu.memory_space<vmem>>, vector<256x384xf32>
    %cst = arith.constant dense<0.000000e+00> : vector<256x256xf32>
    %2 = tpu.matmul %0, %1, %cst {dimension_numbers = #tpu.dot_dimension_numbers<[1], [1], [0], [0], [0, 0, 1, 0], [], []>} : vector<256x384xf32>, vector<256x384xf32>, vector<256x256xf32> -> vector<256x256xf32>
    %c0_3 = arith.constant 0 : index
    %c0_4 = arith.constant 0 : index
    %3 = vector.load %arg4[%c0_3, %c0_4] : memref<1x256xf32, #tpu.memory_space<vmem>>, vector<1x256xf32>
    %4 = vector.broadcast %3 : vector<1x256xf32> to vector<256x256xf32>
    %5 = arith.addf %2, %4 : vector<256x256xf32>
    %c0_5 = arith.constant 0 : index
    %c0_6 = arith.constant 0 : index
    %6 = vector.load %arg5[%c0_5, %c0_6] : memref<256x256xf32, #tpu.memory_space<vmem>>, vector<256x256xf32>
    tpu.vector_store %arg5[%c0_5, %c0_6], %5 {strides = array<i32>} : memref<256x256xf32, #tpu.memory_space<vmem>>, vector<256x256xf32>,
    return
  }
  func.func @transform_0(%arg0: i32, %arg1: i32) -> (i32, i32) {
    %c0_i32 = arith.constant 0 : i32
    %c0_i32_0 = arith.constant 0 : i32
    return %arg0, %c0_i32 : i32, i32
  }
  func.func @transform_1(%arg0: i32, %arg1: i32) -> (i32, i32) {
    %c0_i32 = arith.constant 0 : i32
    %c0_i32_0 = arith.constant 0 : i32
    return %arg1, %c0_i32 : i32, i32
  }
  func.func @transform_2(%arg0: i32, %arg1: i32) -> (i32, i32) {
    %c0_i32 = arith.constant 0 : i32
    %c0_i32_0 = arith.constant 0 : i32
    return %c0_i32, %arg1 : i32, i32
  }
  func.func @transform_3(%arg0: i32, %arg1: i32) -> (i32, i32) {
    %c0_i32 = arith.constant 0 : i32
    return %arg0, %arg1 : i32, i32
  }
}

</mosaic_0001>

<llo_original>
// kernel: tpu_custom_call.1
$region0: #{tpu_custom_call.1}
  #allocation0 [shape = 'u32[]', space=smem, size = 0x4, offset = 0x4, fixed_abs, tag = 'smem constant byte address 0x4 - core index']
  #allocation1 [shape = 'u32[144,128]{1,0:T(1,128)}', space=vmem, size = 0x12000, scoped, tag = 'internal scratch']
  %s0 = inlined_call_operand.hbm [shape: f32[256,384], index: 0, kind: input, shape index: {}]
  %s1 = inlined_call_operand.hbm [shape: f32[256,384], index: 1, kind: input, shape index: {}]
  %s2 = inlined_call_operand.vmem [shape: f32[1,256], index: 2, kind: input, shape index: {}]
  %s3 = inlined_call_operand.hbm [shape: f32[256,256], index: 3, kind: output, shape index: {}]
  %s4 = sld [smem:[#allocation0]]
  $region30: #{tpu_custom_call.1} parent=0
    _
  %s6 = ssub.s32 1, %s4
  %s7 = scalar_select 0, %s6, %s4
  $region1: #{tpu_custom_call.1} parent=0
    #allocation2 [shape = 'u8[393216]{0}', space=vmem, size = 0x60000, scoped, tag = 'input window, operand 0, single buffered']
    #allocation3 [shape = 's32[1]{0}', space=sflag, size = 0x4, scoped, tag = 'scoped memory for tpu_custom_call.1']
    #allocation4 [shape = 's32[1]{0}', space=sflag, size = 0x4, scoped, tag = 'scoped memory for tpu_custom_call.1']
    #allocation5 [shape = 'u8[393216]{0}', space=vmem, size = 0x60000, scoped, tag = 'input window, operand 1, single buffered']
    #allocation6 [shape = 's32[1]{0}', space=sflag, size = 0x4, scoped, tag = 'scoped memory for tpu_custom_call.1']
    #allocation7 [shape = 'u8[262144]{0}', space=vmem, size = 0x40000, scoped, tag = 'output window, operand 0, single buffered']
    %8 = vsyncpa [#allocation3], 0
    %9 = vsyncpa [#allocation6], 0
    %10 = vsyncpa [#allocation4], 0
    // Predicated region
    $region2: #{tpu_custom_call.1} parent=1 // pred_check
      _
    $region3: #{tpu_custom_call.1} parent=1 // pred_check_branch
      %12 = sbr.rel (0) target = $region5
    $region4: #{tpu_custom_call.1} parent=1 // pred_region
      %s14 = ssub.s32 12288, 12288
      %15 = vsyncadd [#allocation3], %s14
      %s16 = sshll.u32 [#allocation2], 4
      %s17 = int_to_ptr.vmem [resolvable:$true] %s16
      %22 = dma.hbm_to_vmem [thread:$0]  %s0, 12288, %s17, [#allocation3], 384, 384, 24
    $region5: #{tpu_custom_call.1} parent=1 // pred_fallthru
      _
    // Predicated region
    $region6: #{tpu_custom_call.1} parent=1 // pred_check
      _
    $region7: #{tpu_custom_call.1} parent=1 // pred_check_branch
      %24 = sbr.rel (0) target = $region9
    $region8: #{tpu_custom_call.1} parent=1 // pred_region
      %s26 = ssub.s32 12288, 12288
      %27 = vsyncadd [#allocation6], %s26
      %s28 = sshll.u32 [#allocation5], 4
      %s29 = int_to_ptr.vmem [resolvable:$true] %s28
      %34 = dma.hbm_to_vmem [thread:$0]  %s1, 12288, %s29, [#allocation6], 384, 384, 24
    $region9: #{tpu_custom_call.1} parent=1 // pred_fallthru
      _
    // Predicated region
    $region10: #{tpu_custom_call.1} parent=1 // pred_check
      _
    $region11: #{tpu_custom_call.1} parent=1 // pred_check_branch
      %36 = sbr.rel (0) target = $region13
    $region12: #{tpu_custom_call.1} parent=1 // pred_region
      _
    $region13: #{tpu_custom_call.1} parent=1 // pred_fallthru
      _
    // Predicated region
    $region14: #{tpu_custom_call.1} parent=1 // pred_check
      _
    $region15: #{tpu_custom_call.1} parent=1 // pred_check_branch
      %38 = sbr.rel (0) target = $region17
    $region16: #{tpu_custom_call.1} parent=1 // pred_region
      %39 = dma.done [#allocation3], 12288
    $region17: #{tpu_custom_call.1} parent=1 // pred_fallthru
      _
    // Predicated region
    $region18: #{tpu_custom_call.1} parent=1 // pred_check
      _
    $region19: #{tpu_custom_call.1} parent=1 // pred_check_branch
      %41 = sbr.rel (0) target = $region21
    $region20: #{tpu_custom_call.1} parent=1 // pred_region
      %42 = dma.done [#allocation6], 12288
    $region21: #{tpu_custom_call.1} parent=1 // pred_fallthru
      _
    %v43 = vld [vmem:[#allocation2] sm:$0xff]
    %v44 = vld [vmem:[#allocation2 + $0x8] sm:$0xff]
    %v45 = vld [vmem:[#allocation2 + $0x10] sm:$0xff]
    %v46 = vld [vmem:[#allocation2 + $0x18] sm:$0xff]
    %v47 = vld [vmem:[#allocation2 + $0x20] sm:$0xff]
    %v48 = vld [vmem:[#allocation2 + $0x28] sm:$0xff]
    %v49 = vld [vmem:[#allocation2 + $0x30] sm:$0xff]
    %v50 = vld [vmem:[#allocation2 + $0x38] sm:$0xff]
    %v51 = vld [vmem:[#allocation2 + $0x40] sm:$0xff]
    %v52 = vld [vmem:[#allocation2 + $0x48] sm:$0xff]
    %v53 = vld [vmem:[#allocation2 + $0x50] sm:$0xff]
    %v54 = vld [vmem:[#allocation2 + $0x58] sm:$0xff]
    %v55 = vld [vmem:[#allocation2 + $0x60] sm:$0xff]
    %v56 = vld [vmem:[#allocation2 + $0x68] sm:$0xff]
    %v57 = vld [vmem:[#allocation2 + $0x70] sm:$0xff]
    %v58 = vld [vmem:[#allocation2 + $0x78] sm:$0xff]
    %v59 = vld [vmem:[#allocation2 + $0x80] sm:$0xff]
    %v60 = vld [vmem:[#allocation2 + $0x88] sm:$0xff]
    %v61 = vld [vmem:[#allocation2 + $0x90] sm:$0xff]
    %v62 = vld [vmem:[#allocation2 + $0x98] sm:$0xff]
    %v63 = vld [vmem:[#allocation2 + $0xa0] sm:$0xff]
    %v64 = vld [vmem:[#allocation2 + $0xa8] sm:$0xff]
    %v65 = vld [vmem:[#allocation2 + $0xb0] sm:$0xff]
    %v66 = vld [vmem:[#allocation2 + $0xb8] sm:$0xff]
    %v67 = vld [vmem:[#allocation2 + $0xc0] sm:$0xff]
    %v68 = vld [vmem:[#allocation2 + $0xc8] sm:$0xff]
    %v69 = vld [vmem:[#allocation2 + $0xd0] sm:$0xff]
    %v70 = vld [vmem:[#allocation2 + $0xd8] sm:$0xff]
    %v71 = vld [vmem:[#allocation2 + $0xe0] sm:$0xff]
    %v72 = vld [vmem:[#allocation2 + $0xe8] sm:$0xff]
    %v73 = vld [vmem:[#allocation2 + $0xf0] sm:$0xff]
    %v74 = vld [vmem:[#allocation2 + $0xf8] sm:$0xff]
    %v75 = vld [vmem:[#allocation2 + $0x100] sm:$0xff]
    %v76 = vld [vmem:[#allocation2 + $0x108] sm:$0xff]
    %v77 = vld [vmem:[#allocation2 + $0x110] sm:$0xff]
    %v78 = vld [vmem:[#allocation2 + $0x118] sm:$0xff]
    %v79 = vld [vmem:[#allocation2 + $0x120] sm:$0xff]
    %v80 = vld [vmem:[#allocation2 + $0x128] sm:$0xff]
    %v81 = vld [vmem:[#allocation2 + $0x130] sm:$0xff]
    %v82 = vld [vmem:[#allocation2 + $0x138] sm:$0xff]
    %v83 = vld [vmem:[#allocation2 + $0x140] sm:$0xff]
    %v84 = vld [vmem:[#allocation2 + $0x148] sm:$0xff]
    %v85 = vld [vmem:[#allocation2 + $0x150] sm:$0xff]
    %v86 = vld [vmem:[#allocation2 + $0x158] sm:$0xff]
    %v87 = vld [vmem:[#allocation2 + $0x160] sm:$0xff]
    %v88 = vld [vmem:[#allocation2 + $0x168] sm:$0xff]
    %v89 = vld [vmem:[#allocation2 + $0x170] sm:$0xff]
    %v90 = vld [vmem:[#allocation2 + $0x178] sm:$0xff]
    %v91 = vld [vmem:[#allocation2 + $0x180] sm:$0xff]
    %v92 = vld [vmem:[#allocation2 + $0x188] sm:$0xff]
    %v93 = vld [vmem:[#allocation2 + $0x190] sm:$0xff]
    %v94 = vld [vmem:[#allocation2 + $0x198] sm:$0xff]
    %v95 = vld [vmem:[#allocation2 + $0x1a0] sm:$0xff]
    %v96 = vld [vmem:[#allocation2 + $0x1a8] sm:$0xff]
    %v97 = vld [vmem:[#allocation2 + $0x1b0] sm:$0xff]
    %v98 = vld [vmem:[#allocation2 + $0x1b8] sm:$0xff]
    %v99 = vld [vmem:[#allocation2 + $0x1c0] sm:$0xff]
    %v100 = vld [vmem:[#allocation2 + $0x1c8] sm:$0xff]
    %v101 = vld [vmem:[#allocation2 + $0x1d0] sm:$0xff]
    %v102 = vld [vmem:[#allocation2 + $0x1d8] sm:$0xff]
    %v103 = vld [vmem:[#allocation2 + $0x1e0] sm:$0xff]
    %v104 = vld [vmem:[#allocation2 + $0x1e8] sm:$0xff]
    %v105 = vld [vmem:[#allocation2 + $0x1f0] sm:$0xff]
    %v106 = vld [vmem:[#allocation2 + $0x1f8] sm:$0xff]
    %v107 = vld [vmem:[#allocation2 + $0x200] sm:$0xff]
    %v108 = vld [vmem:[#allocation2 + $0x208] sm:$0xff]
    %v109 = vld [vmem:[#allocation2 + $0x210] sm:$0xff]
    %v110 = vld [vmem:[#allocation2 + $0x218] sm:$0xff]
    %v111 = vld [vmem:[#allocation2 + $0x220] sm:$0xff]
    %v112 = vld [vmem:[#allocation2 + $0x228] sm:$0xff]
    %v113 = vld [vmem:[#allocation2 + $0x230] sm:$0xff]
    %v114 = vld [vmem:[#allocation2 + $0x238] sm:$0xff]
    %v115 = vld [vmem:[#allocation2 + $0x240] sm:$0xff]
    %v116 = vld [vmem:[#allocation2 + $0x248] sm:$0xff]
    %v117 = vld [vmem:[#allocation2 + $0x250] sm:$0xff]
    %v118 = vld [vmem:[#allocation2 + $0x258] sm:$0xff]
    %v119 = vld [vmem:[#allocation2 + $0x260] sm:$0xff]
    %v120 = vld [vmem:[#allocation2 + $0x268] sm:$0xff]
    %v121 = vld [vmem:[#allocation2 + $0x270] sm:$0xff]
    %v122 = vld [vmem:[#allocation2 + $0x278] sm:$0xff]
    %v123 = vld [vmem:[#allocation2 + $0x280] sm:$0xff]
    %v124 = vld [vmem:[#allocation2 + $0x288] sm:$0xff]
    %v125 = vld [vmem:[#allocation2 + $0x290] sm:$0xff]
    %v126 = vld [vmem:[#allocation2 + $0x298] sm:$0xff]
    %v127 = vld [vmem:[#allocation2 + $0x2a0] sm:$0xff]
    %v128 = vld [vmem:[#allocation2 + $0x2a8] sm:$0xff]
    %v129 = vld [vmem:[#allocation2 + $0x2b0] sm:$0xff]
    %v130 = vld [vmem:[#allocation2 + $0x2b8] sm:$0xff]
    %v131 = vld [vmem:[#allocation2 + $0x2c0] sm:$0xff]
    %v132 = vld [vmem:[#allocation2 + $0x2c8] sm:$0xff]
    %v133 = vld [vmem:[#allocation2 + $0x2d0] sm:$0xff]
    %v134 = vld [vmem:[#allocation2 + $0x2d8] sm:$0xff]
    %v135 = vld [vmem:[#allocation2 + $0x2e0] sm:$0xff]
    %v136 = vld [vmem:[#allocation2 + $0x2e8] sm:$0xff]
    %v137 = vld [vmem:[#allocation2 + $0x2f0] sm:$0xff]
    %v138 = vld [vmem:[#allocation2 + $0x2f8] sm:$0xff]
    %v139 = vld [vmem:[#allocation5] sm:$0xff]
    %v140 = vld [vmem:[#allocation5 + $0x8] sm:$0xff]
    %v141 = vld [vmem:[#allocation5 + $0x10] sm:$0xff]
    %v142 = vld [vmem:[#allocation5 + $0x18] sm:$0xff]
    %v143 = vld [vmem:[#allocation5 + $0x20] sm:$0xff]
    %v144 = vld [vmem:[#allocation5 + $0x28] sm:$0xff]
    %v145 = vld [vmem:[#allocation5 + $0x30] sm:$0xff]
    %v146 = vld [vmem:[#allocation5 + $0x38] sm:$0xff]
    %v147 = vld [vmem:[#allocation5 + $0x40] sm:$0xff]
    %v148 = vld [vmem:[#allocation5 + $0x48] sm:$0xff]
    %v149 = vld [vmem:[#allocation5 + $0x50] sm:$0xff]
    %v150 = vld [vmem:[#allocation5 + $0x58] sm:$0xff]
    %v151 = vld [vmem:[#allocation5 + $0x60] sm:$0xff]
    %v152 = vld [vmem:[#allocation5 + $0x68] sm:$0xff]
    %v153 = vld [vmem:[#allocation5 + $0x70] sm:$0xff]
    %v154 = vld [vmem:[#allocation5 + $0x78] sm:$0xff]
    %v155 = vld [vmem:[#allocation5 + $0x80] sm:$0xff]
    %v156 = vld [vmem:[#allocation5 + $0x88] sm:$0xff]
    %v157 = vld [vmem:[#allocation5 + $0x90] sm:$0xff]
    %v158 = vld [vmem:[#allocation5 + $0x98] sm:$0xff]
    %v159 = vld [vmem:[#allocation5 + $0xa0] sm:$0xff]
    %v160 = vld [vmem:[#allocation5 + $0xa8] sm:$0xff]
    %v161 = vld [vmem:[#allocation5 + $0xb0] sm:$0xff]
    %v162 = vld [vmem:[#allocation5 + $0xb8] sm:$0xff]
    %v163 = vld [vmem:[#allocation5 + $0xc0] sm:$0xff]
    %v164 = vld [vmem:[#allocation5 + $0xc8] sm:$0xff]
    %v165 = vld [vmem:[#allocation5 + $0xd0] sm:$0xff]
    %v166 = vld [vmem:[#allocation5 + $0xd8] sm:$0xff]
    %v167 = vld [vmem:[#allocation5 + $0xe0] sm:$0xff]
    %v168 = vld [vmem:[#allocation5 + $0xe8] sm:$0xff]
    %v169 = vld [vmem:[#allocation5 + $0xf0] sm:$0xff]
    %v170 = vld [vmem:[#allocation5 + $0xf8] sm:$0xff]
    %v171 = vld [vmem:[#allocation5 + $0x100] sm:$0xff]
    %v172 = vld [vmem:[#allocation5 + $0x108] sm:$0xff]
    %v173 = vld [vmem:[#allocation5 + $0x110] sm:$0xff]
    %v174 = vld [vmem:[#allocation5 + $0x118] sm:$0xff]
    %v175 = vld [vmem:[#allocation5 + $0x120] sm:$0xff]
    %v176 = vld [vmem:[#allocation5 + $0x128] sm:$0xff]
    %v177 = vld [vmem:[#allocation5 + $0x130] sm:$0xff]
    %v178 = vld [vmem:[#allocation5 + $0x138] sm:$0xff]
    %v179 = vld [vmem:[#allocation5 + $0x140] sm:$0xff]
    %v180 = vld [vmem:[#allocation5 + $0x148] sm:$0xff]
    %v181 = vld [vmem:[#allocation5 + $0x150] sm:$0xff]
    %v182 = vld [vmem:[#allocation5 + $0x158] sm:$0xff]
    %v183 = vld [vmem:[#allocation5 + $0x160] sm:$0xff]
    %v184 = vld [vmem:[#allocation5 + $0x168] sm:$0xff]
    %v185 = vld [vmem:[#allocation5 + $0x170] sm:$0xff]
    %v186 = vld [vmem:[#allocation5 + $0x178] sm:$0xff]
    %v187 = vld [vmem:[#allocation5 + $0x180] sm:$0xff]
    %v188 = vld [vmem:[#allocation5 + $0x188] sm:$0xff]
    %v189 = vld [vmem:[#allocation5 + $0x190] sm:$0xff]
    %v190 = vld [vmem:[#allocation5 + $0x198] sm:$0xff]
    %v191 = vld [vmem:[#allocation5 + $0x1a0] sm:$0xff]
    %v192 = vld [vmem:[#allocation5 + $0x1a8] sm:$0xff]
    %v193 = vld [vmem:[#allocation5 + $0x1b0] sm:$0xff]
    %v194 = vld [vmem:[#allocation5 + $0x1b8] sm:$0xff]
    %v195 = vld [vmem:[#allocation5 + $0x1c0] sm:$0xff]
    %v196 = vld [vmem:[#allocation5 + $0x1c8] sm:$0xff]
    %v197 = vld [vmem:[#allocation5 + $0x1d0] sm:$0xff]
    %v198 = vld [vmem:[#allocation5 + $0x1d8] sm:$0xff]
    %v199 = vld [vmem:[#allocation5 + $0x1e0] sm:$0xff]
    %v200 = vld [vmem:[#allocation5 + $0x1e8] sm:$0xff]
    %v201 = vld [vmem:[#allocation5 + $0x1f0] sm:$0xff]
    %v202 = vld [vmem:[#allocation5 + $0x1f8] sm:$0xff]
    %v203 = vld [vmem:[#allocation5 + $0x200] sm:$0xff]
    %v204 = vld [vmem:[#allocation5 + $0x208] sm:$0xff]
    %v205 = vld [vmem:[#allocation5 + $0x210] sm:$0xff]
    %v206 = vld [vmem:[#allocation5 + $0x218] sm:$0xff]
    %v207 = vld [vmem:[#allocation5 + $0x220] sm:$0xff]
    %v208 = vld [vmem:[#allocation5 + $0x228] sm:$0xff]
    %v209 = vld [vmem:[#allocation5 + $0x230] sm:$0xff]
    %v210 = vld [vmem:[#allocation5 + $0x238] sm:$0xff]
    %v211 = vld [vmem:[#allocation5 + $0x240] sm:$0xff]
    %v212 = vld [vmem:[#allocation5 + $0x248] sm:$0xff]
    %v213 = vld [vmem:[#allocation5 + $0x250] sm:$0xff]
    %v214 = vld [vmem:[#allocation5 + $0x258] sm:$0xff]
    %v215 = vld [vmem:[#allocation5 + $0x260] sm:$0xff]
    %v216 = vld [vmem:[#allocation5 + $0x268] sm:$0xff]
    %v217 = vld [vmem:[#allocation5 + $0x270] sm:$0xff]
    %v218 = vld [vmem:[#allocation5 + $0x278] sm:$0xff]
    %v219 = vld [vmem:[#allocation5 + $0x280] sm:$0xff]
    %v220 = vld [vmem:[#allocation5 + $0x288] sm:$0xff]
    %v221 = vld [vmem:[#allocation5 + $0x290] sm:$0xff]
    %v222 = vld [vmem:[#allocation5 + $0x298] sm:$0xff]
    %v223 = vld [vmem:[#allocation5 + $0x2a0] sm:$0xff]
    %v224 = vld [vmem:[#allocation5 + $0x2a8] sm:$0xff]
    %v225 = vld [vmem:[#allocation5 + $0x2b0] sm:$0xff]
    %v226 = vld [vmem:[#allocation5 + $0x2b8] sm:$0xff]
    %v227 = vld [vmem:[#allocation5 + $0x2c0] sm:$0xff]
    %v228 = vld [vmem:[#allocation5 + $0x2c8] sm:$0xff]
    %v229 = vld [vmem:[#allocation5 + $0x2d0] sm:$0xff]
    %v230 = vld [vmem:[#allocation5 + $0x2d8] sm:$0xff]
    %v231 = vld [vmem:[#allocation5 + $0x2e0] sm:$0xff]
    %v232 = vld [vmem:[#allocation5 + $0x2e8] sm:$0xff]
    %v233 = vld [vmem:[#allocation5 + $0x2f0] sm:$0xff]
    %v234 = vld [vmem:[#allocation5 + $0x2f8] sm:$0xff]
    %v235 = vld [vmem:[%s2] sm:$0x3]
    %v237 = vlaneseq
    %v238 = vshrl.u32 %v237, 7
    %v239 = vsub.s32 0, %v238
    %v240 = vrot.slane %v235, %v239
    %v241 = vlaneseq
    %v242 = vshrl.u32 %v241, 7
    %v243 = vsub.s32 1, %v242
    %v244 = vrot.slane %v235, %v243
    %247 = vmatprep.subr.mxu0 %v140
    %248 = vmatpush1.xpose.msra.mxu0 %v139
    %249 = vmatprep.subr.mxu0 %v143
    %250 = vmatpush1.xpose.msra.mxu0 %v142
    %251 = vmatprep.subr.mxu0 %v146
    %252 = vmatpush1.xpose.msra.mxu0 %v145
    %253 = vmatprep.subr.mxu0 %v149
    %254 = vmatpush1.xpose.msra.mxu0 %v148
    %255 = vmatprep.subr.mxu0 %v152
    %256 = vmatpush1.xpose.msra.mxu0 %v151
    %257 = vmatprep.subr.mxu0 %v155
    %258 = vmatpush1.xpose.msra.mxu0 %v154
    %259 = vmatprep.subr.mxu0 %v158
    %260 = vmatpush1.xpose.msra.mxu0 %v157
    %261 = vmatprep.subr.mxu0 %v161
    %262 = vmatpush1.xpose.msra.mxu0 %v160
    %263 = vmatprep.subr.mxu0 %v164
    %264 = vmatpush1.xpose.msra.mxu0 %v163
    %265 = vmatprep.subr.mxu0 %v167
    %266 = vmatpush1.xpose.msra.mxu0 %v166
    %267 = vmatprep.subr.mxu0 %v170
    %268 = vmatpush1.xpose.msra.mxu0 %v169
    %269 = vmatprep.subr.mxu0 %v173
    %270 = vmatpush1.xpose.msra.mxu0 %v172
    %271 = vmatprep.subr.mxu0 %v176
    %272 = vmatpush1.xpose.msra.mxu0 %v175
    %273 = vmatprep.subr.mxu0 %v179
    %274 = vmatpush1.xpose.msra.mxu0 %v178
    %275 = vmatprep.subr.mxu0 %v182
    %276 = vmatpush1.xpose.msra.mxu0 %v181
    %277 = vmatprep.subr.mxu0 %v185
    %278 = vmatpush1.xpose.msra.mxu0 %v184
    %279 = vmatprep.subr.mxu0 %v188
    %280 = vmatpush1.xpose.msra.mxu0 %v187
    %281 = vmatprep.subr.mxu0 %v191
    %282 = vmatpush1.xpose.msra.mxu0 %v190
    %283 = vmatprep.subr.mxu0 %v194
    %284 = vmatpush1.xpose.msra.mxu0 %v193
    %285 = vmatprep.subr.mxu0 %v197
    %286 = vmatpush1.xpose.msra.mxu0 %v196
    %287 = vmatprep.subr.mxu0 %v200
    %288 = vmatpush1.xpose.msra.mxu0 %v199
    %289 = vmatprep.subr.mxu0 %v203
    %290 = vmatpush1.xpose.msra.mxu0 %v202
    %291 = vmatprep.subr.mxu0 %v206
    %292 = vmatpush1.xpose.msra.mxu0 %v205
    %293 = vmatprep.subr.mxu0 %v209
    %294 = vmatpush1.xpose.msra.mxu0 %v208
    %295 = vmatprep.subr.mxu0 %v212
    %296 = vmatpush1.xpose.msra.mxu0 %v211
    %297 = vmatprep.subr.mxu0 %v215
    %298 = vmatpush1.xpose.msra.mxu0 %v214
    %299 = vmatprep.subr.mxu0 %v218
    %300 = vmatpush1.xpose.msra.mxu0 %v217
    %301 = vmatprep.subr.mxu0 %v221
    %302 = vmatpush1.xpose.msra.mxu0 %v220
    %303 = vmatprep.subr.mxu0 %v224
    %304 = vmatpush1.xpose.msra.mxu0 %v223
    %305 = vmatprep.subr.mxu0 %v227
    %306 = vmatpush1.xpose.msra.mxu0 %v226
    %307 = vmatprep.subr.mxu0 %v230
    %308 = vmatpush1.xpose.msra.mxu0 %v229
    %309 = vmatprep.subr.mxu0 %v233
    %310 = vmatpush1.xpose.msra.mxu0 %v232
    %311 = vmatprep.mubr.f32.mxu0 %v44
    %312 = vmatmul.mubr.f32.gmra.mrb[0].mxu0 %v43
    %v313 = vpop.f32.mrb[0].mxu0
    %v314 = vadd.f32 %v240, %v313
    %v315 = vpop.f32.mrb[0].mxu0
    %v316 = vadd.f32 %v244, %v315
    %317 = vmatprep.mubr.f32.mxu0 %v47
    %318 = vmatmul.mubr.f32.gmra.mrb[0].mxu0 %v46
    %v319 = vpop.f32.mrb[0].mxu0
    %v320 = vadd.f32 %v240, %v319
    %v321 = vpop.f32.mrb[0].mxu0
    %v322 = vadd.f32 %v244, %v321
    %323 = vmatprep.mubr.f32.mxu0 %v50
    %324 = vmatmul.mubr.f32.gmra.mrb[0].mxu0 %v49
    %v325 = vpop.f32.mrb[0].mxu0
    %v326 = vadd.f32 %v240, %v325
    %v327 = vpop.f32.mrb[0].mxu0
    %v328 = vadd.f32 %v244, %v327
    %329 = vmatprep.mubr.f32.mxu0 %v53
    %330 = vmatmul.mubr.f32.gmra.mrb[0].mxu0 %v52
    %v331 = vpop.f32.mrb[0].mxu0
    %v332 = vadd.f32 %v240, %v331
    %v333 = vpop.f32.mrb[0].mxu0
    %v334 = vadd.f32 %v244, %v333
    %335 = vmatprep.mubr.f32.mxu0 %v56
    %336 = vmatmul.mubr.f32.gmra.mrb[0].mxu0 %v55
    %v337 = vpop.f32.mrb[0].mxu0
    %v338 = vadd.f32 %v240, %v337
    %v339 = vpop.f32.mrb[0].mxu0
    %v340 = vadd.f32 %v244, %v339
    %341 = vmatprep.mubr.f32.mxu0 %v59
    %342 = vmatmul.mubr.f32.gmra.mrb[0].mxu0 %v58
    %v343 = vpop.f32.mrb[0].mxu0
    %v344 = vadd.f32 %v240, %v343
    %v345 = vpop.f32.mrb[0].mxu0
    %v346 = vadd.f32 %v244, %v345
    %347 = vmatprep.mubr.f32.mxu0 %v62
    %348 = vmatmul.mubr.f32.gmra.mrb[0].mxu0 %v61
    %v349 = vpop.f32.mrb[0].mxu0
    %v350 = vadd.f32 %v240, %v349
    %v351 = vpop.f32.mrb[0].mxu0
    %v352 = vadd.f32 %v244, %v351
    %353 = vmatprep.mubr.f32.mxu0 %v65
    %354 = vmatmul.mubr.f32.gmra.mrb[0].mxu0 %v64
    %v355 = vpop.f32.mrb[0].mxu0
    %v356 = vadd.f32 %v240, %v355
    %v357 = vpop.f32.mrb[0].mxu0
    %v358 = vadd.f32 %v244, %v357
    %359 = vmatprep.mubr.f32.mxu0 %v68
    %360 = vmatmul.mubr.f32.gmra.mrb[0].mxu0 %v67
    %v361 = vpop.f32.mrb[0].mxu0
    %v362 = vadd.f32 %v240, %v361
    %v363 = vpop.f32.mrb[0].mxu0
    %v364 = vadd.f32 %v244, %v363
    %365 = vmatprep.mubr.f32.mxu0 %v71
    %366 = vmatmul.mubr.f32.gmra.mrb[0].mxu0 %v70
    %v367 = vpop.f32.mrb[0].mxu0
    %v368 = vadd.f32 %v240, %v367
    %v369 = vpop.f32.mrb[0].mxu0
    %v370 = vadd.f32 %v244, %v369
    %371 = vmatprep.mubr.f32.mxu0 %v74
    %372 = vmatmul.mubr.f32.gmra.mrb[0].mxu0 %v73
    %v373 = vpop.f32.mrb[0].mxu0
    %v374 = vadd.f32 %v240, %v373
    %v375 = vpop.f32.mrb[0].mxu0
    %v376 = vadd.f32 %v244, %v375
    %377 = vmatprep.mubr.f32.mxu0 %v77
    %378 = vmatmul.mubr.f32.gmra.mrb[0].mxu0 %v76
    %v379 = vpop.f32.mrb[0].mxu0
    %v380 = vadd.f32 %v240, %v379
    %v381 = vpop.f32.mrb[0].mxu0
    %v382 = vadd.f32 %v244, %v381
    %383 = vmatprep.mubr.f32.mxu0 %v80
    %384 = vmatmul.mubr.f32.gmra.mrb[0].mxu0 %v79
    %v385 = vpop.f32.mrb[0].mxu0
    %v386 = vadd.f32 %v240, %v385
    %v387 = vpop.f32.mrb[0].mxu0
    %v388 = vadd.f32 %v244, %v387
    %389 = vmatprep.mubr.f32.mxu0 %v83
    %390 = vmatmul.mubr.f32.gmra.mrb[0].mxu0 %v82
    %v391 = vpop.f32.mrb[0].mxu0
    %v392 = vadd.f32 %v240, %v391
    %v393 = vpop.f32.mrb[0].mxu0
    %v394 = vadd.f32 %v244, %v393
    %395 = vmatprep.mubr.f32.mxu0 %v86
    %396 = vmatmul.mubr.f32.gmra.mrb[0].mxu0 %v85
    %v397 = vpop.f32.mrb[0].mxu0
    %v398 = vadd.f32 %v240, %v397
    %v399 = vpop.f32.mrb[0].mxu0
    %v400 = vadd.f32 %v244, %v399
    %401 = vmatprep.mubr.f32.mxu0 %v89
    %402 = vmatmul.mubr.f32.gmra.mrb[0].mxu0 %v88
    %v403 = vpop.f32.mrb[0].mxu0
    %v404 = vadd.f32 %v240, %v403
    %v405 = vpop.f32.mrb[0].mxu0
    %v406 = vadd.f32 %v244, %v405
    %407 = vmatprep.mubr.f32.mxu0 %v92
    %408 = vmatmul.mubr.f32.gmra.mrb[0].mxu0 %v91
    %v409 = vpop.f32.mrb[0].mxu0
    %v410 = vadd.f32 %v240, %v409
    %v411 = vpop.f32.mrb[0].mxu0
    %v412 = vadd.f32 %v244, %v411
    %413 = vmatprep.mubr.f32.mxu0 %v95
    %414 = vmatmul.mubr.f32.gmra.mrb[0].mxu0 %v94
    %v415 = vpop.f32.mrb[0].mxu0
    %v416 = vadd.f32 %v240, %v415
    %v417 = vpop.f32.mrb[0].mxu0
    %v418 = vadd.f32 %v244, %v417
    %419 = vmatprep.mubr.f32.mxu0 %v98
    %420 = vmatmul.mubr.f32.gmra.mrb[0].mxu0 %v97
    %v421 = vpop.f32.mrb[0].mxu0
    %v422 = vadd.f32 %v240, %v421
    %v423 = vpop.f32.mrb[0].mxu0
    %v424 = vadd.f32 %v244, %v423
    %425 = vmatprep.mubr.f32.mxu0 %v101
    %426 = vmatmul.mubr.f32.gmra.mrb[0].mxu0 %v100
    %v427 = vpop.f32.mrb[0].mxu0
    %v428 = vadd.f32 %v240, %v427
    %v429 = vpop.f32.mrb[0].mxu0
    %v430 = vadd.f32 %v244, %v429
    %431 = vmatprep.mubr.f32.mxu0 %v104
    %432 = vmatmul.mubr.f32.gmra.mrb[0].mxu0 %v103
    %v433 = vpop.f32.mrb[0].mxu0
    %v434 = vadd.f32 %v240, %v433
    %v435 = vpop.f32.mrb[0].mxu0
    %v436 = vadd.f32 %v244, %v435
    %437 = vmatprep.mubr.f32.mxu0 %v107
    %438 = vmatmul.mubr.f32.gmra.mrb[0].mxu0 %v106
    %v439 = vpop.f32.mrb[0].mxu0
    %v440 = vadd.f32 %v240, %v439
    %v441 = vpop.f32.mrb[0].mxu0
    %v442 = vadd.f32 %v244, %v441
    %443 = vmatprep.mubr.f32.mxu0 %v110
    %444 = vmatmul.mubr.f32.gmra.mrb[0].mxu0 %v109
    %v445 = vpop.f32.mrb[0].mxu0
    %v446 = vadd.f32 %v240, %v445
    %v447 = vpop.f32.mrb[0].mxu0
    %v448 = vadd.f32 %v244, %v447
    %449 = vmatprep.mubr.f32.mxu0 %v113
    %450 = vmatmul.mubr.f32.gmra.mrb[0].mxu0 %v112
    %v451 = vpop.f32.mrb[0].mxu0
    %v452 = vadd.f32 %v240, %v451
    %v453 = vpop.f32.mrb[0].mxu0
    %v454 = vadd.f32 %v244, %v453
    %455 = vmatprep.mubr.f32.mxu0 %v116
    %456 = vmatmul.mubr.f32.gmra.mrb[0].mxu0 %v115
    %v457 = vpop.f32.mrb[0].mxu0
    %v458 = vadd.f32 %v240, %v457
    %v459 = vpop.f32.mrb[0].mxu0
    %v460 = vadd.f32 %v244, %v459
    %461 = vmatprep.mubr.f32.mxu0 %v119
    %462 = vmatmul.mubr.f32.gmra.mrb[0].mxu0 %v118
    %v463 = vpop.f32.mrb[0].mxu0
    %v464 = vadd.f32 %v240, %v463
    %v465 = vpop.f32.mrb[0].mxu0
    %v466 = vadd.f32 %v244, %v465
    %467 = vmatprep.mubr.f32.mxu0 %v122
    %468 = vmatmul.mubr.f32.gmra.mrb[0].mxu0 %v121
    %v469 = vpop.f32.mrb[0].mxu0
    %v470 = vadd.f32 %v240, %v469
    %v471 = vpop.f32.mrb[0].mxu0
    %v472 = vadd.f32 %v244, %v471
    %473 = vmatprep.mubr.f32.mxu0 %v125
    %474 = vmatmul.mubr.f32.gmra.mrb[0].mxu0 %v124
    %v475 = vpop.f32.mrb[0].mxu0
    %v476 = vadd.f32 %v240, %v475
    %v477 = vpop.f32.mrb[0].mxu0
    %v478 = vadd.f32 %v244, %v477
    %479 = vmatprep.mubr.f32.mxu0 %v128
    %480 = vmatmul.mubr.f32.gmra.mrb[0].mxu0 %v127
    %v481 = vpop.f32.mrb[0].mxu0
    %v482 = vadd.f32 %v240, %v481
    %v483 = vpop.f32.mrb[0].mxu0
    %v484 = vadd.f32 %v244, %v483
    %485 = vmatprep.mubr.f32.mxu0 %v131
    %486 = vmatmul.mubr.f32.gmra.mrb[0].mxu0 %v130
    %v487 = vpop.f32.mrb[0].mxu0
    %v488 = vadd.f32 %v240, %v487
    %v489 = vpop.f32.mrb[0].mxu0
    %v490 = vadd.f32 %v244, %v489
    %491 = vmatprep.mubr.f32.mxu0 %v134
    %492 = vmatmul.mubr.f32.gmra.mrb[0].mxu0 %v133
    %v493 = vpop.f32.mrb[0].mxu0
    %v494 = vadd.f32 %v240, %v493
    %v495 = vpop.f32.mrb[0].mxu0
    %v496 = vadd.f32 %v244, %v495
    %497 = vmatprep.mubr.f32.mxu0 %v137
    %498 = vmatmul.mubr.f32.gmra.mrb[0].mxu0 %v136
    %v499 = vpop.f32.mrb[0].mxu0
    %v500 = vadd.f32 %v240, %v499
    %v501 = vpop.f32.mrb[0].mxu0
    %v502 = vadd.f32 %v244, %v501
    %503 = vdwg.mxu0
    %504 = vmatprep.subr.mxu0 0.0
    %505 = vmatpush1.xpose.msra.mxu0 %v141
    %506 = vmatprep.subr.mxu0 0.0
    %507 = vmatpush1.xpose.msra.mxu0 %v144
    %508 = vmatprep.subr.mxu0 0.0
    %509 = vmatpush1.xpose.msra.mxu0 %v147
    %510 = vmatprep.subr.mxu0 0.0
    %511 = vmatpush1.xpose.msra.mxu0 %v150
    %512 = vmatprep.subr.mxu0 0.0
    %513 = vmatpush1.xpose.msra.mxu0 %v153
    %514 = vmatprep.subr.mxu0 0.0
    %515 = vmatpush1.xpose.msra.mxu0 %v156
    %516 = vmatprep.subr.mxu0 0.0
    %517 = vmatpush1.xpose.msra.mxu0 %v159
    %518 = vmatprep.subr.mxu0 0.0
    %519 = vmatpush1.xpose.msra.mxu0 %v162
    %520 = vmatprep.subr.mxu0 0.0
    %521 = vmatpush1.xpose.msra.mxu0 %v165
    %522 = vmatprep.subr.mxu0 0.0
    %523 = vmatpush1.xpose.msra.mxu0 %v168
    %524 = vmatprep.subr.mxu0 0.0
    %525 = vmatpush1.xpose.msra.mxu0 %v171
    %526 = vmatprep.subr.mxu0 0.0
    %527 = vmatpush1.xpose.msra.mxu0 %v174
    %528 = vmatprep.subr.mxu0 0.0
    %529 = vmatpush1.xpose.msra.mxu0 %v177
    %530 = vmatprep.subr.mxu0 0.0
    %531 = vmatpush1.xpose.msra.mxu0 %v180
    %532 = vmatprep.subr.mxu0 0.0
    %533 = vmatpush1.xpose.msra.mxu0 %v183
    %534 = vmatprep.subr.mxu0 0.0
    %535 = vmatpush1.xpose.msra.mxu0 %v186
    %536 = vmatprep.subr.mxu0 0.0
    %537 = vmatpush1.xpose.msra.mxu0 %v189
    %538 = vmatprep.subr.mxu0 0.0
    %539 = vmatpush1.xpose.msra.mxu0 %v192
    %540 = vmatprep.subr.mxu0 0.0
    %541 = vmatpush1.xpose.msra.mxu0 %v195
    %542 = vmatprep.subr.mxu0 0.0
    %543 = vmatpush1.xpose.msra.mxu0 %v198
    %544 = vmatprep.subr.mxu0 0.0
    %545 = vmatpush1.xpose.msra.mxu0 %v201
    %546 = vmatprep.subr.mxu0 0.0
    %547 = vmatpush1.xpose.msra.mxu0 %v204
    %548 = vmatprep.subr.mxu0 0.0
    %549 = vmatpush1.xpose.msra.mxu0 %v207
    %550 = vmatprep.subr.mxu0 0.0
    %551 = vmatpush1.xpose.msra.mxu0 %v210
    %552 = vmatprep.subr.mxu0 0.0
    %553 = vmatpush1.xpose.msra.mxu0 %v213
    %554 = vmatprep.subr.mxu0 0.0
    %555 = vmatpush1.xpose.msra.mxu0 %v216
    %556 = vmatprep.subr.mxu0 0.0
    %557 = vmatpush1.xpose.msra.mxu0 %v219
    %558 = vmatprep.subr.mxu0 0.0
    %559 = vmatpush1.xpose.msra.mxu0 %v222
    %560 = vmatprep.subr.mxu0 0.0
    %561 = vmatpush1.xpose.msra.mxu0 %v225
    %562 = vmatprep.subr.mxu0 0.0
    %563 = vmatpush1.xpose.msra.mxu0 %v228
    %564 = vmatprep.subr.mxu0 0.0
    %565 = vmatpush1.xpose.msra.mxu0 %v231
    %566 = vmatprep.subr.mxu0 0.0
    %567 = vmatpush1.xpose.msra.mxu0 %v234
    %568 = vmatprep.mubr.f32.mxu0 0.0
    %569 = vmatmul.mubr.f32.gmra.mrb[0].mxu0 %v45
    %v570 = vpop.f32.mrb[0].mxu0
    %v571 = vadd.f32 %v314, %v570
    %v572 = vpop.f32.mrb[0].mxu0
    %v573 = vadd.f32 %v316, %v572
    %574 = vmatprep.mubr.f32.mxu0 0.0
    %575 = vmatmul.mubr.f32.gmra.mrb[0].mxu0 %v48
    %v576 = vpop.f32.mrb[0].mxu0
    %v577 = vadd.f32 %v320, %v576
    %v578 = vpop.f32.mrb[0].mxu0
    %v579 = vadd.f32 %v322, %v578
    %580 = vmatprep.mubr.f32.mxu0 0.0
    %581 = vmatmul.mubr.f32.gmra.mrb[0].mxu0 %v51
    %v582 = vpop.f32.mrb[0].mxu0
    %v583 = vadd.f32 %v326, %v582
    %v584 = vpop.f32.mrb[0].mxu0
    %v585 = vadd.f32 %v328, %v584
    %586 = vmatprep.mubr.f32.mxu0 0.0
    %587 = vmatmul.mubr.f32.gmra.mrb[0].mxu0 %v54
    %v588 = vpop.f32.mrb[0].mxu0
    %v589 = vadd.f32 %v332, %v588
    %v590 = vpop.f32.mrb[0].mxu0
    %v591 = vadd.f32 %v334, %v590
    %592 = vmatprep.mubr.f32.mxu0 0.0
    %593 = vmatmul.mubr.f32.gmra.mrb[0].mxu0 %v57
    %v594 = vpop.f32.mrb[0].mxu0
    %v595 = vadd.f32 %v338, %v594
    %v596 = vpop.f32.mrb[0].mxu0
    %v597 = vadd.f32 %v340, %v596
    %598 = vmatprep.mubr.f32.mxu0 0.0
    %599 = vmatmul.mubr.f32.gmra.mrb[0].mxu0 %v60
    %v600 = vpop.f32.mrb[0].mxu0
    %v601 = vadd.f32 %v344, %v600
    %v602 = vpop.f32.mrb[0].mxu0
    %v603 = vadd.f32 %v346, %v602
    %604 = vmatprep.mubr.f32.mxu0 0.0
    %605 = vmatmul.mubr.f32.gmra.mrb[0].mxu0 %v63
    %v606 = vpop.f32.mrb[0].mxu0
    %v607 = vadd.f32 %v350, %v606
    %v608 = vpop.f32.mrb[0].mxu0
    %v609 = vadd.f32 %v352, %v608
    %610 = vmatprep.mubr.f32.mxu0 0.0
    %611 = vmatmul.mubr.f32.gmra.mrb[0].mxu0 %v66
    %v612 = vpop.f32.mrb[0].mxu0
    %v613 = vadd.f32 %v356, %v612
    %v614 = vpop.f32.mrb[0].mxu0
    %v615 = vadd.f32 %v358, %v614
    %616 = vmatprep.mubr.f32.mxu0 0.0
    %617 = vmatmul.mubr.f32.gmra.mrb[0].mxu0 %v69
    %v618 = vpop.f32.mrb[0].mxu0
    %v619 = vadd.f32 %v362, %v618
    %v620 = vpop.f32.mrb[0].mxu0
    %v621 = vadd.f32 %v364, %v620
    %622 = vmatprep.mubr.f32.mxu0 0.0
    %623 = vmatmul.mubr.f32.gmra.mrb[0].mxu0 %v72
    %v624 = vpop.f32.mrb[0].mxu0
    %v625 = vadd.f32 %v368, %v624
    %v626 = vpop.f32.mrb[0].mxu0
    %v627 = vadd.f32 %v370, %v626
    %628 = vmatprep.mubr.f32.mxu0 0.0
    %629 = vmatmul.mubr.f32.gmra.mrb[0].mxu0 %v75
    %v630 = vpop.f32.mrb[0].mxu0
    %v631 = vadd.f32 %v374, %v630
    %v632 = vpop.f32.mrb[0].mxu0
    %v633 = vadd.f32 %v376, %v632
    %634 = vmatprep.mubr.f32.mxu0 0.0
    %635 = vmatmul.mubr.f32.gmra.mrb[0].mxu0 %v78
    %v636 = vpop.f32.mrb[0].mxu0
    %v637 = vadd.f32 %v380, %v636
    %v638 = vpop.f32.mrb[0].mxu0
    %v639 = vadd.f32 %v382, %v638
    %640 = vmatprep.mubr.f32.mxu0 0.0
    %641 = vmatmul.mubr.f32.gmra.mrb[0].mxu0 %v81
    %v642 = vpop.f32.mrb[0].mxu0
    %v643 = vadd.f32 %v386, %v642
    %v644 = vpop.f32.mrb[0].mxu0
    %v645 = vadd.f32 %v388, %v644
    %646 = vmatprep.mubr.f32.mxu0 0.0
    %647 = vmatmul.mubr.f32.gmra.mrb[0].mxu0 %v84
    %v648 = vpop.f32.mrb[0].mxu0
    %v649 = vadd.f32 %v392, %v648
    %v650 = vpop.f32.mrb[0].mxu0
    %v651 = vadd.f32 %v394, %v650
    %652 = vmatprep.mubr.f32.mxu0 0.0
    %653 = vmatmul.mubr.f32.gmra.mrb[0].mxu0 %v87
    %v654 = vpop.f32.mrb[0].mxu0
    %v655 = vadd.f32 %v398, %v654
    %v656 = vpop.f32.mrb[0].mxu0
    %v657 = vadd.f32 %v400, %v656
    %658 = vmatprep.mubr.f32.mxu0 0.0
    %659 = vmatmul.mubr.f32.gmra.mrb[0].mxu0 %v90
    %v660 = vpop.f32.mrb[0].mxu0
    %v661 = vadd.f32 %v404, %v660
    %v662 = vpop.f32.mrb[0].mxu0
    %v663 = vadd.f32 %v406, %v662
    %664 = vmatprep.mubr.f32.mxu0 0.0
    %665 = vmatmul.mubr.f32.gmra.mrb[0].mxu0 %v93
    %v666 = vpop.f32.mrb[0].mxu0
    %v667 = vadd.f32 %v410, %v666
    %v668 = vpop.f32.mrb[0].mxu0
    %v669 = vadd.f32 %v412, %v668
    %670 = vmatprep.mubr.f32.mxu0 0.0
    %671 = vmatmul.mubr.f32.gmra.mrb[0].mxu0 %v96
    %v672 = vpop.f32.mrb[0].mxu0
    %v673 = vadd.f32 %v416, %v672
    %v674 = vpop.f32.mrb[0].mxu0
    %v675 = vadd.f32 %v418, %v674
    %676 = vmatprep.mubr.f32.mxu0 0.0
    %677 = vmatmul.mubr.f32.gmra.mrb[0].mxu0 %v99
    %v678 = vpop.f32.mrb[0].mxu0
    %v679 = vadd.f32 %v422, %v678
    %v680 = vpop.f32.mrb[0].mxu0
    %v681 = vadd.f32 %v424, %v680
    %682 = vmatprep.mubr.f32.mxu0 0.0
    %683 = vmatmul.mubr.f32.gmra.mrb[0].mxu0 %v102
    %v684 = vpop.f32.mrb[0].mxu0
    %v685 = vadd.f32 %v428, %v684
    %v686 = vpop.f32.mrb[0].mxu0
    %v687 = vadd.f32 %v430, %v686
    %688 = vmatprep.mubr.f32.mxu0 0.0
    %689 = vmatmul.mubr.f32.gmra.mrb[0].mxu0 %v105
    %v690 = vpop.f32.mrb[0].mxu0
    %v691 = vadd.f32 %v434, %v690
    %v692 = vpop.f32.mrb[0].mxu0
    %v693 = vadd.f32 %v436, %v692
    %694 = vmatprep.mubr.f32.mxu0 0.0
    %695 = vmatmul.mubr.f32.gmra.mrb[0].mxu0 %v108
    %v696 = vpop.f32.mrb[0].mxu0
    %v697 = vadd.f32 %v440, %v696
    %v698 = vpop.f32.mrb[0].mxu0
    %v699 = vadd.f32 %v442, %v698
    %700 = vmatprep.mubr.f32.mxu0 0.0
    %701 = vmatmul.mubr.f32.gmra.mrb[0].mxu0 %v111
    %v702 = vpop.f32.mrb[0].mxu0
    %v703 = vadd.f32 %v446, %v702
    %v704 = vpop.f32.mrb[0].mxu0
    %v705 = vadd.f32 %v448, %v704
    %706 = vmatprep.mubr.f32.mxu0 0.0
    %707 = vmatmul.mubr.f32.gmra.mrb[0].mxu0 %v114
    %v708 = vpop.f32.mrb[0].mxu0
    %v709 = vadd.f32 %v452, %v708
    %v710 = vpop.f32.mrb[0].mxu0
    %v711 = vadd.f32 %v454, %v710
    %712 = vmatprep.mubr.f32.mxu0 0.0
    %713 = vmatmul.mubr.f32.gmra.mrb[0].mxu0 %v117
    %v714 = vpop.f32.mrb[0].mxu0
    %v715 = vadd.f32 %v458, %v714
    %v716 = vpop.f32.mrb[0].mxu0
    %v717 = vadd.f32 %v460, %v716
    %718 = vmatprep.mubr.f32.mxu0 0.0
    %719 = vmatmul.mubr.f32.gmra.mrb[0].mxu0 %v120
    %v720 = vpop.f32.mrb[0].mxu0
    %v721 = vadd.f32 %v464, %v720
    %v722 = vpop.f32.mrb[0].mxu0
    %v723 = vadd.f32 %v466, %v722
    %724 = vmatprep.mubr.f32.mxu0 0.0
    %725 = vmatmul.mubr.f32.gmra.mrb[0].mxu0 %v123
    %v726 = vpop.f32.mrb[0].mxu0
    %v727 = vadd.f32 %v470, %v726
    %v728 = vpop.f32.mrb[0].mxu0
    %v729 = vadd.f32 %v472, %v728
    %730 = vmatprep.mubr.f32.mxu0 0.0
    %731 = vmatmul.mubr.f32.gmra.mrb[0].mxu0 %v126
    %v732 = vpop.f32.mrb[0].mxu0
    %v733 = vadd.f32 %v476, %v732
    %v734 = vpop.f32.mrb[0].mxu0
    %v735 = vadd.f32 %v478, %v734
    %736 = vmatprep.mubr.f32.mxu0 0.0
    %737 = vmatmul.mubr.f32.gmra.mrb[0].mxu0 %v129
    %v738 = vpop.f32.mrb[0].mxu0
    %v739 = vadd.f32 %v482, %v738
    %v740 = vpop.f32.mrb[0].mxu0
    %v741 = vadd.f32 %v484, %v740
    %742 = vmatprep.mubr.f32.mxu0 0.0
    %743 = vmatmul.mubr.f32.gmra.mrb[0].mxu0 %v132
    %v744 = vpop.f32.mrb[0].mxu0
    %v745 = vadd.f32 %v488, %v744
    %v746 = vpop.f32.mrb[0].mxu0
    %v747 = vadd.f32 %v490, %v746
    %748 = vmatprep.mubr.f32.mxu0 0.0
    %749 = vmatmul.mubr.f32.gmra.mrb[0].mxu0 %v135
    %v750 = vpop.f32.mrb[0].mxu0
    %v751 = vadd.f32 %v494, %v750
    %v752 = vpop.f32.mrb[0].mxu0
    %v753 = vadd.f32 %v496, %v752
    %754 = vmatprep.mubr.f32.mxu0 0.0
    %755 = vmatmul.mubr.f32.gmra.mrb[0].mxu0 %v138
    %v756 = vpop.f32.mrb[0].mxu0
    %v757 = vadd.f32 %v500, %v756
    %v758 = vpop.f32.mrb[0].mxu0
    %v759 = vadd.f32 %v502, %v758
    %760 = vdwg.mxu0
    %761 = vst [vmem:[#allocation7] sm:$0xff] %v571
    %762 = vst [vmem:[#allocation7 + $0x8] sm:$0xff] %v573
    %763 = vst [vmem:[#allocation7 + $0x10] sm:$0xff] %v577
    %764 = vst [vmem:[#allocation7 + $0x18] sm:$0xff] %v579
    %765 = vst [vmem:[#allocation7 + $0x20] sm:$0xff] %v583
    %766 = vst [vmem:[#allocation7 + $0x28] sm:$0xff] %v585
    %767 = vst [vmem:[#allocation7 + $0x30] sm:$0xff] %v589
    %768 = vst [vmem:[#allocation7 + $0x38] sm:$0xff] %v591
    %769 = vst [vmem:[#allocation7 + $0x40] sm:$0xff] %v595
    %770 = vst [vmem:[#allocation7 + $0x48] sm:$0xff] %v597
    %771 = vst [vmem:[#allocation7 + $0x50] sm:$0xff] %v601
    %772 = vst [vmem:[#allocation7 + $0x58] sm:$0xff] %v603
    %773 = vst [vmem:[#allocation7 + $0x60] sm:$0xff] %v607
    %774 = vst [vmem:[#allocation7 + $0x68] sm:$0xff] %v609
    %775 = vst [vmem:[#allocation7 + $0x70] sm:$0xff] %v613
    %776 = vst [vmem:[#allocation7 + $0x78] sm:$0xff] %v615
    %777 = vst [vmem:[#allocation7 + $0x80] sm:$0xff] %v619
    %778 = vst [vmem:[#allocation7 + $0x88] sm:$0xff] %v621
    %779 = vst [vmem:[#allocation7 + $0x90] sm:$0xff] %v625
    %780 = vst [vmem:[#allocation7 + $0x98] sm:$0xff] %v627
    %781 = vst [vmem:[#allocation7 + $0xa0] sm:$0xff] %v631
    %782 = vst [vmem:[#allocation7 + $0xa8] sm:$0xff] %v633
    %783 = vst [vmem:[#allocation7 + $0xb0] sm:$0xff] %v637
    %784 = vst [vmem:[#allocation7 + $0xb8] sm:$0xff] %v639
    %785 = vst [vmem:[#allocation7 + $0xc0] sm:$0xff] %v643
    %786 = vst [vmem:[#allocation7 + $0xc8] sm:$0xff] %v645
    %787 = vst [vmem:[#allocation7 + $0xd0] sm:$0xff] %v649
    %788 = vst [vmem:[#allocation7 + $0xd8] sm:$0xff] %v651
    %789 = vst [vmem:[#allocation7 + $0xe0] sm:$0xff] %v655
    %790 = vst [vmem:[#allocation7 + $0xe8] sm:$0xff] %v657
    %791 = vst [vmem:[#allocation7 + $0xf0] sm:$0xff] %v661
    %792 = vst [vmem:[#allocation7 + $0xf8] sm:$0xff] %v663
    %793 = vst [vmem:[#allocation7 + $0x100] sm:$0xff] %v667
    %794 = vst [vmem:[#allocation7 + $0x108] sm:$0xff] %v669
    %795 = vst [vmem:[#allocation7 + $0x110] sm:$0xff] %v673
    %796 = vst [vmem:[#allocation7 + $0x118] sm:$0xff] %v675
    %797 = vst [vmem:[#allocation7 + $0x120] sm:$0xff] %v679
    %798 = vst [vmem:[#allocation7 + $0x128] sm:$0xff] %v681
    %799 = vst [vmem:[#allocation7 + $0x130] sm:$0xff] %v685
    %800 = vst [vmem:[#allocation7 + $0x138] sm:$0xff] %v687
    %801 = vst [vmem:[#allocation7 + $0x140] sm:$0xff] %v691
    %802 = vst [vmem:[#allocation7 + $0x148] sm:$0xff] %v693
    %803 = vst [vmem:[#allocation7 + $0x150] sm:$0xff] %v697
    %804 = vst [vmem:[#allocation7 + $0x158] sm:$0xff] %v699
    %805 = vst [vmem:[#allocation7 + $0x160] sm:$0xff] %v703
    %806 = vst [vmem:[#allocation7 + $0x168] sm:$0xff] %v705
    %807 = vst [vmem:[#allocation7 + $0x170] sm:$0xff] %v709
    %808 = vst [vmem:[#allocation7 + $0x178] sm:$0xff] %v711
    %809 = vst [vmem:[#allocation7 + $0x180] sm:$0xff] %v715
    %810 = vst [vmem:[#allocation7 + $0x188] sm:$0xff] %v717
    %811 = vst [vmem:[#allocation7 + $0x190] sm:$0xff] %v721
    %812 = vst [vmem:[#allocation7 + $0x198] sm:$0xff] %v723
    %813 = vst [vmem:[#allocation7 + $0x1a0] sm:$0xff] %v727
    %814 = vst [vmem:[#allocation7 + $0x1a8] sm:$0xff] %v729
    %815 = vst [vmem:[#allocation7 + $0x1b0] sm:$0xff] %v733
    %816 = vst [vmem:[#allocation7 + $0x1b8] sm:$0xff] %v735
    %817 = vst [vmem:[#allocation7 + $0x1c0] sm:$0xff] %v739
    %818 = vst [vmem:[#allocation7 + $0x1c8] sm:$0xff] %v741
    %819 = vst [vmem:[#allocation7 + $0x1d0] sm:$0xff] %v745
    %820 = vst [vmem:[#allocation7 + $0x1d8] sm:$0xff] %v747
    %821 = vst [vmem:[#allocation7 + $0x1e0] sm:$0xff] %v751
    %822 = vst [vmem:[#allocation7 + $0x1e8] sm:$0xff] %v753
    %823 = vst [vmem:[#allocation7 + $0x1f0] sm:$0xff] %v757
    %824 = vst [vmem:[#allocation7 + $0x1f8] sm:$0xff] %v759
    // Predicated region
    $region22: #{tpu_custom_call.1} parent=1 // pred_check
      _
    $region23: #{tpu_custom_call.1} parent=1 // pred_check_branch
      %826 = sbr.rel (0) target = $region25
    $region24: #{tpu_custom_call.1} parent=1 // pred_region
      %s828 = ssub.s32 8192, 8192
      %829 = vsyncadd [#allocation4], %s828
      %s830 = sshll.u32 [#allocation7], 4
      %s831 = int_to_ptr.vmem [resolvable:$true] %s830
      %836 = dma.vmem_to_hbm [thread:$0]  %s831, 8192, %s3, [#allocation4], 256, 256, 16
    $region25: #{tpu_custom_call.1} parent=1 // pred_fallthru
      _
    // Predicated region
    $region26: #{tpu_custom_call.1} parent=1 // pred_check
      _
    $region27: #{tpu_custom_call.1} parent=1 // pred_check_branch
      %838 = sbr.rel (0) target = $region29
    $region28: #{tpu_custom_call.1} parent=1 // pred_region
      %839 = dma.done [#allocation4], 8192
    $region29: #{tpu_custom_call.1} parent=1 // pred_fallthru
      _
    %840 = vsyncpa [#allocation3], 1
    %841 = vsyncpa [#allocation6], 1
    %842 = vsyncpa [#allocation4], 1

</llo_original>
